<compile_context>
chip_gen: v7x
topology: tpu7x:2x2x1
jax: 0.10.0
libtpu: 0.0.40
codegen_flags: <defaults>
</compile_context>

<pallas_src>
import functools

import jax
import jax.numpy as jnp
from jax.experimental import pallas as pl
from jax.experimental.pallas import tpu as pltpu


def _round_up(x: int, mult: int) -> int:
    return (x + mult - 1) // mult * mult


def _cdiv(a: int, b: int) -> int:
    return (a + b - 1) // b


def _choose_tiles(N: int, tm: int, tk: int):
    if tm % 128 != 0 or tk % 128 != 0:
        raise ValueError(f"tm/tk must be multiples of 128, got tm={tm}, tk={tk}")
    n128 = _round_up(N, 128)
    tm = min(tm, n128)
    tk = min(tk, n128)
    # v7x megacore: the i (row-tile) axis is "parallel"; prefer an even tile
    # count so both TensorCores get equal work.  Only shrink tm if it stays
    # >= 256 (smaller tiles cost more in DMA efficiency than an uneven split
    # saves).  No effect on v5e/v6e (1 TC) or on small problems.
    if n128 > tm and _cdiv(N, tm) % 2 == 1:
        for cand in range(tm - 128, 255, -128):
            if _cdiv(N, cand) % 2 == 0:
                tm = cand
                break
    return tm, tk


# --------------------------------------------------------------------------- #
# Pass 1: Z = X @ W  (X and W each read from HBM exactly once)
# --------------------------------------------------------------------------- #
def _xw_kernel(x_ref, w_ref, z_ref):
    z_ref[...] = jnp.dot(
        x_ref[...], w_ref[...], preferred_element_type=jnp.float32
    ).astype(z_ref.dtype)


# --------------------------------------------------------------------------- #
# Pass 2: out = relu(A_hat @ Z)  (HBM-bound on the A_hat stream)
# --------------------------------------------------------------------------- #
def _az_relu_resident_kernel(a_ref, z_ref, o_ref, acc_ref, *, tk):
    """Z is the full (Nc, hp) array, DMA'd once and VMEM-resident."""
    k = pl.program_id(1)

    @pl.when(k == 0)
    def _init():
        acc_ref[...] = jnp.zeros_like(acc_ref)

    start = pl.multiple_of(k * tk, 128)
    z_blk = z_ref[pl.ds(start, tk), :]
    acc_ref[...] += jnp.dot(a_ref[...], z_blk, preferred_element_type=jnp.float32)

    @pl.when(k == pl.num_programs(1) - 1)
    def _finalize():
        # sigma = ReLU, applied only once the k-reduction is complete.
        o_ref[...] = jnp.maximum(acc_ref[...], 0.0).astype(o_ref.dtype)


def _az_relu_streamed_kernel(a_ref, z_ref, o_ref, acc_ref):
    """Fallback for very large N: Z streamed per (tk, hp) block."""
    k = pl.program_id(1)

    @pl.when(k == 0)
    def _init():
        acc_ref[...] = jnp.zeros_like(acc_ref)

    acc_ref[...] += jnp.dot(a_ref[...], z_ref[...],
                            preferred_element_type=jnp.float32)

    @pl.when(k == pl.num_programs(1) - 1)
    def _finalize():
        o_ref[...] = jnp.maximum(acc_ref[...], 0.0).astype(o_ref.dtype)


# --------------------------------------------------------------------------- #
# Hot path (expects pre-padded / pre-cast operands from prepare_gcn_operands)
# --------------------------------------------------------------------------- #
def _gcn_forward_padded(A_p, X_p, W_p, *, N, h, tm, tk, out_dtype,
                        z_resident_max_bytes):
    Nr, Nc = A_p.shape
    Nc2, mp = X_p.shape
    mp2, hp = W_p.shape
    assert Nc == Nc2 and mp == mp2, "padded operand shape mismatch"
    assert Nr % tm == 0 and Nc % tk == 0, "padded extents must divide tiles"

    cdt = A_p.dtype
    bytes_c = jnp.dtype(cdt).itemsize
    out_bytes = jnp.dtype(out_dtype).itemsize

    # ---- Pass 1: Z = X @ W ------------------------------------------------ #
    z = pl.pallas_call(
        _xw_kernel,
        out_shape=jax.ShapeDtypeStruct((Nc, hp), cdt),
        grid=(Nc // tk,),
        in_specs=[
            pl.BlockSpec((tk, mp), lambda r: (r, 0)),   # X row tile
            pl.BlockSpec((mp, hp), lambda r: (0, 0)),   # W, VMEM-resident
        ],
        out_specs=pl.BlockSpec((tk, hp), lambda r: (r, 0)),
        compiler_params=pltpu.CompilerParams(
            dimension_semantics=("parallel",)),
    )(X_p, W_p)

    # ---- Pass 2: relu(A_hat @ Z) ------------------------------------------ #
    z_bytes = Nc * hp * bytes_c
    z_resident = z_bytes <= z_resident_max_bytes

    vmem_est = (2 * tm * tk * bytes_c                                  # A tiles
                + (2 * z_bytes if z_resident else 2 * tk * hp * bytes_c)
                + 2 * tm * hp * out_bytes                              # out tiles
                + tm * hp * 4)                                         # f32 acc
    cp_kwargs = dict(dimension_semantics=("parallel", "arbitrary"))
    if vmem_est > (12 << 20):
        # Raise the scoped-VMEM limit explicitly, with headroom, but stay well
        # under v7x's 64 MiB physical VMEM so double-buffering survives.
        cp_kwargs["vmem_limit_bytes"] = int(min(vmem_est + (4 << 20), 48 << 20))

    if z_resident:
        kernel = functools.partial(_az_relu_resident_kernel, tk=tk)
        z_spec = pl.BlockSpec((Nc, hp), lambda i, k: (0, 0))  # single DMA
    else:
        kernel = _az_relu_streamed_kernel
        z_spec = pl.BlockSpec((tk, hp), lambda i, k: (k, 0))

    out_p = pl.pallas_call(
        kernel,
        out_shape=jax.ShapeDtypeStruct((Nr, hp), out_dtype),
        grid=(Nr // tm, Nc // tk),
        in_specs=[
            pl.BlockSpec((tm, tk), lambda i, k: (i, k)),       # A_hat tile
            z_spec,
        ],
        out_specs=pl.BlockSpec((tm, hp), lambda i, k: (i, 0)),
        scratch_shapes=[pltpu.VMEM((tm, hp), jnp.float32)],    # f32 accumulator
        compiler_params=pltpu.CompilerParams(**cp_kwargs),
    )(A_p, z)

    return out_p[:N, :h]


gcn_forward_padded = jax.jit(
    _gcn_forward_padded,
    static_argnames=("N", "h", "tm", "tk", "out_dtype", "z_resident_max_bytes"),
)


def prepare_gcn_operands(A_hat, X, W, *, tm: int = 512, tk: int = 512,
                         compute_dtype=jnp.bfloat16):
    """One-time cast + pad.  Do this OUTSIDE the hot loop and reuse the result:
    re-casting/padding the N x N adjacency every forward costs ~3x the kernel's
    own HBM traffic."""
    N, N2 = A_hat.shape
    Nx, m = X.shape
    mW, h = W.shape
    assert N == N2 == Nx and m == mW, "shape mismatch"

    tm, tk = _choose_tiles(N, tm, tk)
    Nr = _round_up(N, tm)        # padded output-row / A_hat-row extent
    Nc = _round_up(N, tk)        # padded contraction (node) extent
    mp = _round_up(m, 128)       # lane-dense feature dim
    hp = _round_up(h, 128)       # lane-dense hidden dim (unmasked stores)

    # Zero padding contributes nothing to either matmul.
    A_p = jnp.pad(A_hat.astype(compute_dtype), ((0, Nr - N), (0, Nc - N)))
    X_p = jnp.pad(X.astype(compute_dtype), ((0, Nc - N), (0, mp - m)))
    W_p = jnp.pad(W.astype(compute_dtype), ((0, mp - m), (0, hp - h)))
    meta = dict(N=N, h=h, tm=tm, tk=tk)
    return A_p, X_p, W_p, meta


def gcn_layer_forward(A_hat, X, W, *, tm: int = 512, tk: int = 512,
                      compute_dtype=jnp.bfloat16, out_dtype=None,
                      z_resident_max_bytes: int = 4 << 20):
    """GCNLayer.forward: relu(A_hat @ (X @ W)).

    Convenience wrapper (prep + hot path).  For repeated calls on the same
    graph, call prepare_gcn_operands() once and reuse its result.
    """
    if out_dtype is None:
        out_dtype = compute_dtype
    A_p, X_p, W_p, meta = prepare_gcn_operands(
        A_hat, X, W, tm=tm, tk=tk, compute_dtype=compute_dtype)
    return gcn_forward_padded(A_p, X_p, W_p, out_dtype=out_dtype,
                              z_resident_max_bytes=z_resident_max_bytes, **meta)


def xavier_uniform(key, m, h, dtype=jnp.float32):
    bound = jnp.sqrt(6.0 / (m + h))
    return jax.random.uniform(key, (m, h), dtype=dtype, minval=-bound, maxval=bound)


if __name__ == "__main__":
    key = jax.random.PRNGKey(0)
    k_adj, k_x, k_w = jax.random.split(key, 3)

    # Small, deliberately ragged shapes: N=320 pads to 384; with 128-tiles the
    # dominant kernel runs a 3x3 grid (multi-tile k-accumulation, pl.when
    # init/finalize and padding paths all exercised).  m=96, h=48 pad to 128.
    N, m, h = 320, 96, 48

    # Symmetric, self-looped, row-normalised adjacency (dense A_hat).
    A = (jax.random.uniform(k_adj, (N, N)) < 0.05).astype(jnp.float32)
    A = jnp.maximum(A, A.T) + jnp.eye(N, dtype=jnp.float32)
    deg = jnp.sum(A, axis=1, keepdims=True)
    A_hat = A / deg

    X = jax.random.normal(k_x, (N, m), dtype=jnp.float32)
    W = xavier_uniform(k_w, m, h)

    # Plain-JAX reference with the module's association: relu(A_hat @ (X @ W)).
    ref = jnp.maximum(A_hat @ (X @ W), 0.0)

    # 1) f32 path, 128-tiles (3x3 grid), Z VMEM-resident -> tight check.
    out_f32 = jax.block_until_ready(gcn_layer_forward(
        A_hat, X, W, tm=128, tk=128,
        compute_dtype=jnp.float32, out_dtype=jnp.float32))

    # 2) f32 path, Z streamed per k-block (large-N fallback) -> tight check.
    out_f32_stream = jax.block_until_ready(gcn_layer_forward(
        A_hat, X, W, tm=128, tk=128,
        compute_dtype=jnp.float32, out_dtype=jnp.float32,
        z_resident_max_bytes=0))

    # 3) Fast path: bf16 operands + bf16 output, default (clamped) 512 tiles.
    out_bf16 = jax.block_until_ready(gcn_layer_forward(A_hat, X, W))

    assert out_f32.shape == (N, h)
    assert out_f32_stream.shape == (N, h)
    assert out_bf16.shape == (N, h)
    # Tight checks: kernel tiling / accumulation / ReLU logic is exact in f32.
    assert jnp.allclose(out_f32, ref, atol=1e-4, rtol=1e-4)
    assert jnp.allclose(out_f32_stream, ref, atol=1e-4, rtol=1e-4)
    # Loose check: bf16 operand/output rounding only (accumulation stays f32).
    assert jnp.allclose(out_bf16.astype(jnp.float32), ref, atol=5e-2, rtol=5e-2)

    print("KERNEL_OK")
</pallas_src>

<mosaic_0001>
module attributes {stable_mosaic.version = 11 : i64} {
  func.func @_xw_kernel(%arg0: i32, %arg1: memref<128x128xf32, #tpu.memory_space<vmem>>, %arg2: memref<128x128xf32, #tpu.memory_space<vmem>>, %arg3: memref<128x128xf32, #tpu.memory_space<vmem>>) attributes {dimension_semantics = [#tpu.dimension_semantics<parallel>], iteration_bounds = array<i64: 3>, scalar_prefetch = 0 : i64, scratch_operands = 0 : i64, tpu.core_type = #tpu.core_type<tc>, window_params = [{transform_indices = @transform_0, window_bounds = array<i64: 128, 128>}, {pipeline_mode = #tpu.pipeline_mode<synchronous>, transform_indices = @transform_1, window_bounds = array<i64: 128, 128>}, {transform_indices = @transform_2, window_bounds = array<i64: 128, 128>}]} {
    %c0 = arith.constant 0 : index
    %c0_0 = arith.constant 0 : index
    %0 = vector.load %arg1[%c0, %c0_0] : memref<128x128xf32, #tpu.memory_space<vmem>>, vector<128x128xf32>
    %c0_1 = arith.constant 0 : index
    %c0_2 = arith.constant 0 : index
    %1 = vector.load %arg2[%c0_1, %c0_2] : memref<128x128xf32, #tpu.memory_space<vmem>>, vector<128x128xf32>
    %cst = arith.constant dense<0.000000e+00> : vector<128x128xf32>
    %2 = tpu.matmul %0, %1, %cst {dimension_numbers = #tpu.dot_dimension_numbers<[1], [0], [0], [1], [0, 0, 1, 1], [], []>} : vector<128x128xf32>, vector<128x128xf32>, vector<128x128xf32> -> vector<128x128xf32>
    %c0_3 = arith.constant 0 : index
    %c0_4 = arith.constant 0 : index
    %3 = vector.load %arg3[%c0_3, %c0_4] : memref<128x128xf32, #tpu.memory_space<vmem>>, vector<128x128xf32>
    tpu.vector_store %arg3[%c0_3, %c0_4], %2 {strides = array<i32>} : memref<128x128xf32, #tpu.memory_space<vmem>>, vector<128x128xf32>,
    return
  }
  func.func @transform_0(%arg0: i32) -> (i32, i32) {
    %c0_i32 = arith.constant 0 : i32
    %c0_i32_0 = arith.constant 0 : i32
    return %arg0, %c0_i32 : i32, i32
  }
  func.func @transform_1(%arg0: i32) -> (i32, i32) {
    %c0_i32 = arith.constant 0 : i32
    %c0_i32_0 = arith.constant 0 : i32
    %c0_i32_1 = arith.constant 0 : i32
    return %c0_i32, %c0_i32_0 : i32, i32
  }
  func.func @transform_2(%arg0: i32) -> (i32, i32) {
    %c0_i32 = arith.constant 0 : i32
    %c0_i32_0 = arith.constant 0 : i32
    return %arg0, %c0_i32 : i32, i32
  }
}

module attributes {stable_mosaic.version = 11 : i64} {
  func.func @_az_relu_resident_kernel(%arg0: i32, %arg1: i32, %arg2: memref<128x128xf32, #tpu.memory_space<vmem>>, %arg3: memref<384x128xf32, #tpu.memory_space<vmem>>, %arg4: memref<128x128xf32, #tpu.memory_space<vmem>>, %arg5: memref<128x128xf32, #tpu.memory_space<vmem>>) attributes {dimension_semantics = [#tpu.dimension_semantics<parallel>, #tpu.dimension_semantics<arbitrary>], iteration_bounds = array<i64: 3, 3>, scalar_prefetch = 0 : i64, scratch_operands = 1 : i64, tpu.core_type = #tpu.core_type<tc>, window_params = [{transform_indices = @transform_0, window_bounds = array<i64: 128, 128>}, {pipeline_mode = #tpu.pipeline_mode<synchronous>, transform_indices = @transform_1, window_bounds = array<i64: 384, 128>}, {transform_indices = @transform_2, window_bounds = array<i64: 128, 128>}]} {
    %c0_i32 = arith.constant 0 : i32
    %0 = arith.cmpi eq, %arg1, %c0_i32 : i32
    %1 = arith.extui %0 : i1 to i32
    %c0_i32_0 = arith.constant 0 : i32
    %2 = arith.cmpi ne, %1, %c0_i32_0 : i32
    scf.if %2 {
      %cst_8 = arith.constant 0.000000e+00 : f32
      %15 = vector.broadcast %cst_8 : f32 to vector<128x128xf32>
      %c0_9 = arith.constant 0 : index
      %c0_10 = arith.constant 0 : index
      %16 = vector.load %arg5[%c0_9, %c0_10] : memref<128x128xf32, #tpu.memory_space<vmem>>, vector<128x128xf32>
      tpu.vector_store %arg5[%c0_9, %c0_10], %15 {strides = array<i32>} : memref<128x128xf32, #tpu.memory_space<vmem>>, vector<128x128xf32>,
    } else {
    }
    %c128_i32 = arith.constant 128 : i32
    %3 = arith.muli %arg1, %c128_i32 : i32
    %4 = tpu.assume_multiple %3, 128 : i32
    %5 = arith.index_cast %4 : i32 to index
    %c0 = arith.constant 0 : index
    %6 = vector.load %arg3[%5, %c0] : memref<384x128xf32, #tpu.memory_space<vmem>>, vector<128x128xf32>
    %c0_1 = arith.constant 0 : index
    %c0_2 = arith.constant 0 : index
    %7 = vector.load %arg5[%c0_1, %c0_2] : memref<128x128xf32, #tpu.memory_space<vmem>>, vector<128x128xf32>
    %c0_3 = arith.constant 0 : index
    %c0_4 = arith.constant 0 : index
    %8 = vector.load %arg2[%c0_3, %c0_4] : memref<128x128xf32, #tpu.memory_space<vmem>>, vector<128x128xf32>
    %cst = arith.constant dense<0.000000e+00> : vector<128x128xf32>
    %9 = tpu.matmul %8, %6, %cst {dimension_numbers = #tpu.dot_dimension_numbers<[1], [0], [0], [1], [0, 0, 1, 1], [], []>} : vector<128x128xf32>, vector<128x128xf32>, vector<128x128xf32> -> vector<128x128xf32>
    %10 = arith.addf %7, %9 : vector<128x128xf32>
    %c0_5 = arith.constant 0 : index
    %c0_6 = arith.constant 0 : index
    %11 = vector.load %arg5[%c0_5, %c0_6] : memref<128x128xf32, #tpu.memory_space<vmem>>, vector<128x128xf32>
    tpu.vector_store %arg5[%c0_5, %c0_6], %10 {strides = array<i32>} : memref<128x128xf32, #tpu.memory_space<vmem>>, vector<128x128xf32>,
    %c2_i32 = arith.constant 2 : i32
    %12 = arith.cmpi eq, %arg1, %c2_i32 : i32
    %13 = arith.extui %12 : i1 to i32
    %c0_i32_7 = arith.constant 0 : i32
    %14 = arith.cmpi ne, %13, %c0_i32_7 : i32
    scf.if %14 {
      %c0_8 = arith.constant 0 : index
      %c0_9 = arith.constant 0 : index
      %15 = vector.load %arg5[%c0_8, %c0_9] : memref<128x128xf32, #tpu.memory_space<vmem>>, vector<128x128xf32>
      %cst_10 = arith.constant 0.000000e+00 : f32
      %16 = vector.broadcast %cst_10 : f32 to vector<128x128xf32>
      %17 = arith.maximumf %15, %16 : vector<128x128xf32>
      %c0_11 = arith.constant 0 : index
      %c0_12 = arith.constant 0 : index
      %18 = vector.load %arg4[%c0_11, %c0_12] : memref<128x128xf32, #tpu.memory_space<vmem>>, vector<128x128xf32>
      tpu.vector_store %arg4[%c0_11, %c0_12], %17 {strides = array<i32>} : memref<128x128xf32, #tpu.memory_space<vmem>>, vector<128x128xf32>,
    } else {
    }
    return
  }
  func.func @transform_0(%arg0: i32, %arg1: i32) -> (i32, i32) {
    %c0_i32 = arith.constant 0 : i32
    return %arg0, %arg1 : i32, i32
  }
  func.func @transform_1(%arg0: i32, %arg1: i32) -> (i32, i32) {
    %c0_i32 = arith.constant 0 : i32
    %c0_i32_0 = arith.constant 0 : i32
    %c0_i32_1 = arith.constant 0 : i32
    return %c0_i32, %c0_i32_0 : i32, i32
  }
  func.func @transform_2(%arg0: i32, %arg1: i32) -> (i32, i32) {
    %c0_i32 = arith.constant 0 : i32
    %c0_i32_0 = arith.constant 0 : i32
    return %arg0, %c0_i32 : i32, i32
  }
}

</mosaic_0001>

<llo_original>
// kernel: _gcn_forward_padded.2
$region0: #{_gcn_forward_padded.2}
  #allocation0 [shape = 'u32[]', space=smem, size = 0x4, offset = 0x4, fixed_abs, tag = 'smem constant byte address 0x4 - core index']
  #allocation1 [shape = 'u32[144,128]{1,0:T(1,128)}', space=vmem, size = 0x12000, scoped, tag = 'internal scratch']
  %s0 = inlined_call_operand.hbm [shape: f32[384,128], index: 0, kind: input, shape index: {}]
  %s1 = inlined_call_operand.hbm [shape: f32[128,128], index: 1, kind: input, shape index: {}]
  %s2 = inlined_call_operand.vmem [shape: f32[384,128], index: 2, kind: output, shape index: {}]
  %s3 = sld [smem:[#allocation0]]
  $region49: #{_gcn_forward_padded.2} parent=0
    _
  %s5 = ssub.s32 1, %s3
  %s6 = scalar_select 0, %s5, %s3
  $region1: #{_gcn_forward_padded.2} parent=0
    #allocation2 [shape = 'u8[131072]{0}', space=vmem, size = 0x20000, scoped, tag = 'input window, operand 0']
    #allocation3 [shape = 's32[2]{0}', space=sflag, size = 0x8, scoped, tag = 'scoped memory for _gcn_forward_padded.2']
    #allocation4 [shape = 'u8[65536]{0}', space=vmem, size = 0x10000, scoped, tag = 'input window, operand 1, single buffered']
    #allocation5 [shape = 's32[1]{0}', space=sflag, size = 0x4, scoped, tag = 'scoped memory for _gcn_forward_padded.2']
    %7 = vsyncpa [#allocation3], 0
    %s8 = scalar_lea.sflag [#allocation3], 1
    %9 = vsyncpa %s8, 0
    %10 = vsyncpa [#allocation5], 0
    loop: start=0, step=1, limit=5
    $region2: #{_gcn_forward_padded.2} parent=1 // loop_pre_header
      _
    $region3: #{_gcn_forward_padded.2} parent=1 // loop_header
      %s12 = sphi 0, %s16
      %p13 = scmp.ge.s32.totalorder %s12, 5
      %s22 = sphi 0, %s24
      %s25 = sphi 0, %s22
      %s26 = sphi 0, %s25
      %s42 = sphi 0, %s26
      %s46 = sphi 0, %s46
      %s48 = sphi 0, %s46
      %s49 = sphi 0, %s48
      %s63 = sphi 0, %s49
      %s69 = sphi 0, %s71
      %s72 = sphi 0, %s69
      %s73 = sphi 0, %s72
      %s89 = sphi 0, %s73
    $region4: #{_gcn_forward_padded.2} parent=1 // loop_header_branch
      %15 = sbr.rel (%p13) target = $region8
    $region5: #{_gcn_forward_padded.2} parent=1 // loop_body
      %s17 = ssub.s32 %s12, 1
      %s18 = ssub.s32 %s12, 2
      %s19 = sadd.s32 %s12, 1
      %s20 = ssub.s32 %s12, %s19
      %p21 = scmp.eq.s32.totalorder %s20, 0
      %s23 = sadd.s32 %s22, 1
      %s24 = scalar_select %p21, %s22, %s23
      %p27 = pneg %p21
      %p28 = scmp.eq.s32.totalorder %s12, 2
      %p29 = por %p27, %p28
      %p30 = scmp.ne.s32.totalorder %s22, %s25
      %p31 = scmp.eq.s32.totalorder %s12, 0
      %p32 = por %p30, %p31
      %p33 = scmp.ne.s32.totalorder %s22, %s25
      %p34 = scmp.eq.s32.totalorder %s17, 2
      %p35 = por %p33, %p34
      %p36 = scmp.ne.s32.totalorder %s25, %s26
      %p37 = scmp.eq.s32.totalorder %s17, 0
      %p38 = por %p36, %p37
      %p39 = scmp.ne.s32.totalorder %s25, %s26
      %p40 = scmp.eq.s32.totalorder %s18, 2
      %p41 = por %p39, %p40
      %p43 = scmp.ne.s32.totalorder %s26, %s42
      %p44 = scmp.eq.s32.totalorder %s18, 0
      %p45 = por %p43, %p44
      %s47 = sadd.s32 %s46, 1
      %p50 = scmp.eq.s32.totalorder %s12, 2
      %p51 = scmp.ne.s32.totalorder %s46, %s48
      %p52 = scmp.eq.s32.totalorder %s12, 0
      %p53 = por %p51, %p52
      %p54 = scmp.ne.s32.totalorder %s46, %s48
      %p55 = scmp.eq.s32.totalorder %s17, 2
      %p56 = por %p54, %p55
      %p57 = scmp.ne.s32.totalorder %s48, %s49
      %p58 = scmp.eq.s32.totalorder %s17, 0
      %p59 = por %p57, %p58
      %p60 = scmp.ne.s32.totalorder %s48, %s49
      %p61 = scmp.eq.s32.totalorder %s18, 2
      %p62 = por %p60, %p61
      %p64 = scmp.ne.s32.totalorder %s49, %s63
      %p65 = scmp.eq.s32.totalorder %s18, 0
      %p66 = por %p64, %p65
      %s67 = ssub.s32 %s12, %s19
      %p68 = scmp.eq.s32.totalorder %s67, 0
      %s70 = sadd.s32 %s69, 1
      %s71 = scalar_select %p68, %s69, %s70
      %p74 = pneg %p68
      %p75 = scmp.eq.s32.totalorder %s12, 2
      %p76 = por %p74, %p75
      %p77 = scmp.ne.s32.totalorder %s69, %s72
      %p78 = scmp.eq.s32.totalorder %s12, 0
      %p79 = por %p77, %p78
      %p80 = scmp.ne.s32.totalorder %s69, %s72
      %p81 = scmp.eq.s32.totalorder %s17, 2
      %p82 = por %p80, %p81
      %p83 = scmp.ne.s32.totalorder %s72, %s73
      %p84 = scmp.eq.s32.totalorder %s17, 0
      %p85 = por %p83, %p84
      %p86 = scmp.ne.s32.totalorder %s72, %s73
      %p87 = scmp.eq.s32.totalorder %s18, 2
      %p88 = por %p86, %p87
      %p90 = scmp.ne.s32.totalorder %s73, %s89
      %p91 = scmp.eq.s32.totalorder %s18, 0
      %p92 = por %p90, %p91
      %p93 = scmp.le.s32.totalorder 1, %s12
      %p94 = scmp.lt.s32.totalorder %s12, 4
      %p95 = pnand %p93, %p94
      %p96 = pneg %p95
      // Predicated region
      $region9: #{_gcn_forward_padded.2} parent=5 // pred_check
        _
      $region10: #{_gcn_forward_padded.2} parent=5 // pred_check_branch
        %98 = sbr.rel (%p95) target = $region12
      $region11: #{_gcn_forward_padded.2} parent=5 // pred_region
        %s99 = ssub.s32 %s12, 1
        // Predicated region
        $region13: #{_gcn_forward_padded.2} parent=11 // pred_check
          %p100 = pneg %p59
        $region14: #{_gcn_forward_padded.2} parent=11 // pred_check_branch
          %102 = sbr.rel (%p100) target = $region16
        $region15: #{_gcn_forward_padded.2} parent=11 // pred_region
          %s104 = ssub.s32 2048, 2048
          %105 = vsyncadd [#allocation5], %s104
          %s106 = sshll.u32 [#allocation4], 4
          %s107 = int_to_ptr.vmem [resolvable:$true] %s106
          %112 = dma.hbm_to_vmem [thread:$0]  %s1, 2048, %s107, [#allocation5], 128, 128, 8
        $region16: #{_gcn_forward_padded.2} parent=11 // pred_fallthru
          _
      $region12: #{_gcn_forward_padded.2} parent=5 // pred_fallthru
        _
      %p113 = scmp.lt.s32.totalorder %s12, 3
      // Predicated region
      $region17: #{_gcn_forward_padded.2} parent=5 // pred_check
        %p114 = pneg %p113
      $region18: #{_gcn_forward_padded.2} parent=5 // pred_check_branch
        %116 = sbr.rel (%p114) target = $region20
      $region19: #{_gcn_forward_padded.2} parent=5 // pred_region
        // Predicated region
        $region21: #{_gcn_forward_padded.2} parent=19 // pred_check
          %p117 = pneg %p32
        $region22: #{_gcn_forward_padded.2} parent=19 // pred_check_branch
          %119 = sbr.rel (%p117) target = $region24
        $region23: #{_gcn_forward_padded.2} parent=19 // pred_region
          %s120 = sand.u32 %s22, 1
          %s121 = scalar_lea.sflag [#allocation3], %s120
          %s122 = sand.u32 %s22, 1
          %s123 = smul.addr %s122, 128
          %s124 = scalar_lea.vmem [#allocation2], %s123
          %s125 = smul.u32 16, %s12
          %s127 = ssub.s32 2048, 2048
          %128 = vsyncadd %s121, %s127
          %s129 = smul.addr %s125, 128
          %s130 = scalar_lea.hbm %s0, %s129
          %s131 = sshll.u32 %s124, 4
          %s132 = int_to_ptr.vmem [resolvable:$true] %s131
          %137 = dma.hbm_to_vmem [thread:$0]  %s130, 2048, %s132, %s121, 128, 128, 8
        $region24: #{_gcn_forward_padded.2} parent=19 // pred_fallthru
          _
      $region20: #{_gcn_forward_padded.2} parent=5 // pred_fallthru
        _
      %p138 = scmp.le.s32.totalorder 1, %s12
      %p139 = scmp.lt.s32.totalorder %s12, 4
      %p140 = pnand %p138, %p139
      %p141 = pneg %p140
      // Predicated region
      $region25: #{_gcn_forward_padded.2} parent=5 // pred_check
        _
      $region26: #{_gcn_forward_padded.2} parent=5 // pred_check_branch
        %143 = sbr.rel (%p140) target = $region28
      $region27: #{_gcn_forward_padded.2} parent=5 // pred_region
        %s144 = ssub.s32 %s12, 1
        %s145 = sand.u32 %s25, 1
        %s146 = scalar_lea.sflag [#allocation3], %s145
        %s147 = sand.u32 %s25, 1
        %s148 = smul.addr %s147, 128
        %s149 = scalar_lea.vmem [#allocation2], %s148
        // Predicated region
        $region29: #{_gcn_forward_padded.2} parent=27 // pred_check
          %p150 = pneg %p38
        $region30: #{_gcn_forward_padded.2} parent=27 // pred_check_branch
          %152 = sbr.rel (%p150) target = $region32
        $region31: #{_gcn_forward_padded.2} parent=27 // pred_region
          %153 = dma.done %s146, 2048
        $region32: #{_gcn_forward_padded.2} parent=27 // pred_fallthru
          _
        // Predicated region
        $region33: #{_gcn_forward_padded.2} parent=27 // pred_check
          %p154 = pneg %p59
        $region34: #{_gcn_forward_padded.2} parent=27 // pred_check_branch
          %156 = sbr.rel (%p154) target = $region36
        $region35: #{_gcn_forward_padded.2} parent=27 // pred_region
          %157 = dma.done [#allocation5], 2048
        $region36: #{_gcn_forward_padded.2} parent=27 // pred_fallthru
          _
        %s158 = sand.u32 %s25, 1
        %s159 = scalar_lea.sflag [#allocation3], %s158
        %s160 = sand.u32 %s25, 1
        %s161 = smul.addr %s160, 128
        %s162 = scalar_lea.vmem [#allocation2], %s161
        %p163 = pneg %p38
        %p164 = pneg %p35
        %p165 = pneg %p59
        %p166 = pneg %p56
        %p167 = pneg %p85
        %p168 = pneg %p82
        %s169 = smul.u32 16, %s17
        %p170 = scmp.lt.s32.totalorder %s169, 47
        %s171 = scalar_select %p170, %s169, 47
        %s172 = smul.addr %s171, 8
        %s173 = scalar_lea.vmem %s2, %s172
        %s174 = smul.u32 16, %s17
        %s175 = smul.u32 16, %s17
        %p176 = scmp.lt.s32.totalorder %s175, 47
        %s177 = scalar_select %p176, %s175, 47
        %s178 = smul.addr %s177, 8
        %s179 = scalar_lea.vmem %s2, %s178
        %s180 = smul.u32 16, %s17
        %v181 = vld [vmem:[%s149] sm:$0xff]
        %v182 = vld [vmem:[%s149 + $0x8] sm:$0xff]
        %v183 = vld [vmem:[%s149 + $0x10] sm:$0xff]
        %v184 = vld [vmem:[%s149 + $0x18] sm:$0xff]
        %v185 = vld [vmem:[%s149 + $0x20] sm:$0xff]
        %v186 = vld [vmem:[%s149 + $0x28] sm:$0xff]
        %v187 = vld [vmem:[%s149 + $0x30] sm:$0xff]
        %v188 = vld [vmem:[%s149 + $0x38] sm:$0xff]
        %v189 = vld [vmem:[%s149 + $0x40] sm:$0xff]
        %v190 = vld [vmem:[%s149 + $0x48] sm:$0xff]
        %v191 = vld [vmem:[%s149 + $0x50] sm:$0xff]
        %v192 = vld [vmem:[%s149 + $0x58] sm:$0xff]
        %v193 = vld [vmem:[%s149 + $0x60] sm:$0xff]
        %v194 = vld [vmem:[%s149 + $0x68] sm:$0xff]
        %v195 = vld [vmem:[%s149 + $0x70] sm:$0xff]
        %v196 = vld [vmem:[%s149 + $0x78] sm:$0xff]
        %v197 = vld [vmem:[#allocation4] sm:$0xff]
        %v198 = vld [vmem:[#allocation4 + $0x8] sm:$0xff]
        %v199 = vld [vmem:[#allocation4 + $0x10] sm:$0xff]
        %v200 = vld [vmem:[#allocation4 + $0x18] sm:$0xff]
        %v201 = vld [vmem:[#allocation4 + $0x20] sm:$0xff]
        %v202 = vld [vmem:[#allocation4 + $0x28] sm:$0xff]
        %v203 = vld [vmem:[#allocation4 + $0x30] sm:$0xff]
        %v204 = vld [vmem:[#allocation4 + $0x38] sm:$0xff]
        %v205 = vld [vmem:[#allocation4 + $0x40] sm:$0xff]
        %v206 = vld [vmem:[#allocation4 + $0x48] sm:$0xff]
        %v207 = vld [vmem:[#allocation4 + $0x50] sm:$0xff]
        %v208 = vld [vmem:[#allocation4 + $0x58] sm:$0xff]
        %v209 = vld [vmem:[#allocation4 + $0x60] sm:$0xff]
        %v210 = vld [vmem:[#allocation4 + $0x68] sm:$0xff]
        %v211 = vld [vmem:[#allocation4 + $0x70] sm:$0xff]
        %v212 = vld [vmem:[#allocation4 + $0x78] sm:$0xff]
        %213 = vmatprep.subr.mxu0 0.0
        %214 = vmatpush1.msra.mxu0 %v197
        %215 = vmatprep.subr.mxu0 0.0
        %216 = vmatpush1.msra.mxu0 %v198
        %217 = vmatprep.subr.mxu0 0.0
        %218 = vmatpush1.msra.mxu0 %v199
        %219 = vmatprep.subr.mxu0 0.0
        %220 = vmatpush1.msra.mxu0 %v200
        %221 = vmatprep.subr.mxu0 0.0
        %222 = vmatpush1.msra.mxu0 %v201
        %223 = vmatprep.subr.mxu0 0.0
        %224 = vmatpush1.msra.mxu0 %v202
        %225 = vmatprep.subr.mxu0 0.0
        %226 = vmatpush1.msra.mxu0 %v203
        %227 = vmatprep.subr.mxu0 0.0
        %228 = vmatpush1.msra.mxu0 %v204
        %229 = vmatprep.subr.mxu0 0.0
        %230 = vmatpush1.msra.mxu0 %v205
        %231 = vmatprep.subr.mxu0 0.0
        %232 = vmatpush1.msra.mxu0 %v206
        %233 = vmatprep.subr.mxu0 0.0
        %234 = vmatpush1.msra.mxu0 %v207
        %235 = vmatprep.subr.mxu0 0.0
        %236 = vmatpush1.msra.mxu0 %v208
        %237 = vmatprep.subr.mxu0 0.0
        %238 = vmatpush1.msra.mxu0 %v209
        %239 = vmatprep.subr.mxu0 0.0
        %240 = vmatpush1.msra.mxu0 %v210
        %241 = vmatprep.subr.mxu0 0.0
        %242 = vmatpush1.msra.mxu0 %v211
        %243 = vmatprep.subr.mxu0 0.0
        %244 = vmatpush1.msra.mxu0 %v212
        %245 = vmatprep.subr.mxu0 0.0
        %246 = vmatpush1.msra.mxu0 0.0
        %247 = vmatprep.subr.mxu0 0.0
        %248 = vmatpush1.msra.mxu0 0.0
        %249 = vmatprep.subr.mxu0 0.0
        %250 = vmatpush1.msra.mxu0 0.0
        %251 = vmatprep.subr.mxu0 0.0
        %252 = vmatpush1.msra.mxu0 0.0
        %253 = vmatprep.subr.mxu0 0.0
        %254 = vmatpush1.msra.mxu0 0.0
        %255 = vmatprep.subr.mxu0 0.0
        %256 = vmatpush1.msra.mxu0 0.0
        %257 = vmatprep.subr.mxu0 0.0
        %258 = vmatpush1.msra.mxu0 0.0
        %259 = vmatprep.subr.mxu0 0.0
        %260 = vmatpush1.msra.mxu0 0.0
        %261 = vmatprep.subr.mxu0 0.0
        %262 = vmatpush1.msra.mxu0 0.0
        %263 = vmatprep.subr.mxu0 0.0
        %264 = vmatpush1.msra.mxu0 0.0
        %265 = vmatprep.subr.mxu0 0.0
        %266 = vmatpush1.msra.mxu0 0.0
        %267 = vmatprep.subr.mxu0 0.0
        %268 = vmatpush1.msra.mxu0 0.0
        %269 = vmatprep.subr.mxu0 0.0
        %270 = vmatpush1.msra.mxu0 0.0
        %271 = vmatprep.subr.mxu0 0.0
        %272 = vmatpush1.msra.mxu0 0.0
        %273 = vmatprep.subr.mxu0 0.0
        %274 = vmatpush1.msra.mxu0 0.0
        %275 = vmatprep.subr.mxu0 0.0
        %276 = vmatpush1.msra.mxu0 0.0
        %277 = vmatprep.mubr.f32.mxu0 0.0
        %278 = vmatmul.mubr.f32.gmra.mrb[0].mxu0 %v181
        %v279 = vpop.f32.mrb[0].mxu0
        %v280 = vadd.f32 0.0, %v279
        %v281 = vpop.f32.mrb[0].mxu0
        %282 = vmatprep.mubr.f32.mxu0 0.0
        %283 = vmatmul.mubr.f32.gmra.mrb[0].mxu0 %v182
        %v284 = vpop.f32.mrb[0].mxu0
        %v285 = vadd.f32 0.0, %v284
        %v286 = vpop.f32.mrb[0].mxu0
        %287 = vmatprep.mubr.f32.mxu0 0.0
        %288 = vmatmul.mubr.f32.gmra.mrb[0].mxu0 %v183
        %v289 = vpop.f32.mrb[0].mxu0
        %v290 = vadd.f32 0.0, %v289
        %v291 = vpop.f32.mrb[0].mxu0
        %292 = vmatprep.mubr.f32.mxu0 0.0
        %293 = vmatmul.mubr.f32.gmra.mrb[0].mxu0 %v184
        %v294 = vpop.f32.mrb[0].mxu0
        %v295 = vadd.f32 0.0, %v294
        %v296 = vpop.f32.mrb[0].mxu0
        %297 = vmatprep.mubr.f32.mxu0 0.0
        %298 = vmatmul.mubr.f32.gmra.mrb[0].mxu0 %v185
        %v299 = vpop.f32.mrb[0].mxu0
        %v300 = vadd.f32 0.0, %v299
        %v301 = vpop.f32.mrb[0].mxu0
        %302 = vmatprep.mubr.f32.mxu0 0.0
        %303 = vmatmul.mubr.f32.gmra.mrb[0].mxu0 %v186
        %v304 = vpop.f32.mrb[0].mxu0
        %v305 = vadd.f32 0.0, %v304
        %v306 = vpop.f32.mrb[0].mxu0
        %307 = vmatprep.mubr.f32.mxu0 0.0
        %308 = vmatmul.mubr.f32.gmra.mrb[0].mxu0 %v187
        %v309 = vpop.f32.mrb[0].mxu0
        %v310 = vadd.f32 0.0, %v309
        %v311 = vpop.f32.mrb[0].mxu0
        %312 = vmatprep.mubr.f32.mxu0 0.0
        %313 = vmatmul.mubr.f32.gmra.mrb[0].mxu0 %v188
        %v314 = vpop.f32.mrb[0].mxu0
        %v315 = vadd.f32 0.0, %v314
        %v316 = vpop.f32.mrb[0].mxu0
        %317 = vmatprep.mubr.f32.mxu0 0.0
        %318 = vmatmul.mubr.f32.gmra.mrb[0].mxu0 %v189
        %v319 = vpop.f32.mrb[0].mxu0
        %v320 = vadd.f32 0.0, %v319
        %v321 = vpop.f32.mrb[0].mxu0
        %322 = vmatprep.mubr.f32.mxu0 0.0
        %323 = vmatmul.mubr.f32.gmra.mrb[0].mxu0 %v190
        %v324 = vpop.f32.mrb[0].mxu0
        %v325 = vadd.f32 0.0, %v324
        %v326 = vpop.f32.mrb[0].mxu0
        %327 = vmatprep.mubr.f32.mxu0 0.0
        %328 = vmatmul.mubr.f32.gmra.mrb[0].mxu0 %v191
        %v329 = vpop.f32.mrb[0].mxu0
        %v330 = vadd.f32 0.0, %v329
        %v331 = vpop.f32.mrb[0].mxu0
        %332 = vmatprep.mubr.f32.mxu0 0.0
        %333 = vmatmul.mubr.f32.gmra.mrb[0].mxu0 %v192
        %v334 = vpop.f32.mrb[0].mxu0
        %v335 = vadd.f32 0.0, %v334
        %v336 = vpop.f32.mrb[0].mxu0
        %337 = vmatprep.mubr.f32.mxu0 0.0
        %338 = vmatmul.mubr.f32.gmra.mrb[0].mxu0 %v193
        %v339 = vpop.f32.mrb[0].mxu0
        %v340 = vadd.f32 0.0, %v339
        %v341 = vpop.f32.mrb[0].mxu0
        %342 = vmatprep.mubr.f32.mxu0 0.0
        %343 = vmatmul.mubr.f32.gmra.mrb[0].mxu0 %v194
        %v344 = vpop.f32.mrb[0].mxu0
        %v345 = vadd.f32 0.0, %v344
        %v346 = vpop.f32.mrb[0].mxu0
        %347 = vmatprep.mubr.f32.mxu0 0.0
        %348 = vmatmul.mubr.f32.gmra.mrb[0].mxu0 %v195
        %v349 = vpop.f32.mrb[0].mxu0
        %v350 = vadd.f32 0.0, %v349
        %v351 = vpop.f32.mrb[0].mxu0
        %352 = vmatprep.mubr.f32.mxu0 0.0
        %353 = vmatmul.mubr.f32.gmra.mrb[0].mxu0 %v196
        %v354 = vpop.f32.mrb[0].mxu0
        %v355 = vadd.f32 0.0, %v354
        %v356 = vpop.f32.mrb[0].mxu0
        %357 = vdwg.mxu0
        %358 = vst [vmem:[%s179] sm:$0xff] %v280
        %359 = vst [vmem:[%s179 + $0x8] sm:$0xff] %v285
        %360 = vst [vmem:[%s179 + $0x10] sm:$0xff] %v290
        %361 = vst [vmem:[%s179 + $0x18] sm:$0xff] %v295
        %362 = vst [vmem:[%s179 + $0x20] sm:$0xff] %v300
        %363 = vst [vmem:[%s179 + $0x28] sm:$0xff] %v305
        %364 = vst [vmem:[%s179 + $0x30] sm:$0xff] %v310
        %365 = vst [vmem:[%s179 + $0x38] sm:$0xff] %v315
        %366 = vst [vmem:[%s179 + $0x40] sm:$0xff] %v320
        %367 = vst [vmem:[%s179 + $0x48] sm:$0xff] %v325
        %368 = vst [vmem:[%s179 + $0x50] sm:$0xff] %v330
        %369 = vst [vmem:[%s179 + $0x58] sm:$0xff] %v335
        %370 = vst [vmem:[%s179 + $0x60] sm:$0xff] %v340
        %371 = vst [vmem:[%s179 + $0x68] sm:$0xff] %v345
        %372 = vst [vmem:[%s179 + $0x70] sm:$0xff] %v350
        %373 = vst [vmem:[%s179 + $0x78] sm:$0xff] %v355
        %s374 = smul.u32 16, %s17
        %p375 = scmp.lt.s32.totalorder %s374, 47
        %s376 = scalar_select %p375, %s374, 47
        %s377 = smul.addr %s376, 8
        %s378 = scalar_lea.vmem %s2, %s377
        // Predicated region
        $region37: #{_gcn_forward_padded.2} parent=27 // pred_check
          %p379 = pneg %p82
        $region38: #{_gcn_forward_padded.2} parent=27 // pred_check_branch
          %381 = sbr.rel (%p379) target = $region40
        $region39: #{_gcn_forward_padded.2} parent=27 // pred_region
          %s382 = smul.u32 16, %s17
        $region40: #{_gcn_forward_padded.2} parent=27 // pred_fallthru
          _
      $region28: #{_gcn_forward_padded.2} parent=5 // pred_fallthru
        _
      %p383 = scmp.le.s32.totalorder 2, %s12
      // Predicated region
      $region41: #{_gcn_forward_padded.2} parent=5 // pred_check
        %p384 = pneg %p383
      $region42: #{_gcn_forward_padded.2} parent=5 // pred_check_branch
        %386 = sbr.rel (%p384) target = $region44
      $region43: #{_gcn_forward_padded.2} parent=5 // pred_region
        %s387 = ssub.s32 %s12, 2
        // Predicated region
        $region45: #{_gcn_forward_padded.2} parent=43 // pred_check
          %p388 = pneg %p88
        $region46: #{_gcn_forward_padded.2} parent=43 // pred_check_branch
          %390 = sbr.rel (%p388) target = $region48
        $region47: #{_gcn_forward_padded.2} parent=43 // pred_region
          %s391 = smul.u32 16, %s18
          %p392 = scmp.lt.s32.totalorder %s391, 47
          %s393 = scalar_select %p392, %s391, 47
          %s394 = smul.addr %s393, 8
          %s395 = scalar_lea.vmem %s2, %s394
        $region48: #{_gcn_forward_padded.2} parent=43 // pred_fallthru
          _
      $region44: #{_gcn_forward_padded.2} parent=5 // pred_fallthru
        _
    $region6: #{_gcn_forward_padded.2} parent=1 // loop_footer
      %s16 = sadd.s32 1, %s12
    $region7: #{_gcn_forward_padded.2} parent=1 // loop_footer_branch
      %11 = sbr.rel target = $region3
    $region8: #{_gcn_forward_padded.2} parent=1 // loop_exit
      _
    %396 = vsyncpa [#allocation3], 1
    %s397 = scalar_lea.sflag [#allocation3], 1
    %398 = vsyncpa %s397, 1
    %399 = vsyncpa [#allocation5], 1

// kernel: _gcn_forward_padded.3
$region0: #{_gcn_forward_padded.3}
  #allocation0 [shape = 'u32[]', space=smem, size = 0x4, offset = 0x4, fixed_abs, tag = 'smem constant byte address 0x4 - core index']
  #allocation1 [shape = 'u32[144,128]{1,0:T(1,128)}', space=vmem, size = 0x12000, scoped, tag = 'internal scratch']
  #allocation2 [shape = 'f32[128,128]{1,0:T(8,128)}', space=vmem, size = 0x10000, scoped, tag = 'scratch operand']
  %s0 = inlined_call_operand.hbm [shape: f32[384,384], index: 0, kind: input, shape index: {}]
  %s1 = inlined_call_operand.vmem [shape: f32[384,128], index: 1, kind: input, shape index: {}]
  %s2 = inlined_call_operand.vmem [shape: f32[384,128], index: 2, kind: output, shape index: {}]
  %s3 = sld [smem:[#allocation0]]
  $region53: #{_gcn_forward_padded.3} parent=0
    _
  %s5 = ssub.s32 1, %s3
  %s6 = scalar_select 0, %s5, %s3
  $region1: #{_gcn_forward_padded.3} parent=0
    #allocation3 [shape = 'u8[131072]{0}', space=vmem, size = 0x20000, scoped, tag = 'input window, operand 0']
    #allocation4 [shape = 's32[2]{0}', space=sflag, size = 0x8, scoped, tag = 'scoped memory for _gcn_forward_padded.3']
    %7 = vsyncpa [#allocation4], 0
    %s8 = scalar_lea.sflag [#allocation4], 1
    %9 = vsyncpa %s8, 0
    loop: start=0, step=1, limit=11
    $region2: #{_gcn_forward_padded.3} parent=1 // loop_pre_header
      _
    $region3: #{_gcn_forward_padded.3} parent=1 // loop_header
      %s11 = sphi 0, %s15
      %p12 = scmp.ge.s32.totalorder %s11, 11
      %s18 = sphi 0, %s30
      %s19 = sphi 0, %s26
      %s20 = sphi 0, %s18
      %s21 = sphi 0, %s19
      %s22 = sphi 0, %s20
      %s23 = sphi 0, %s21
      %s35 = sphi 0, %s37
      %s38 = sphi 0, %s35
      %s39 = sphi 0, %s38
      %s55 = sphi 0, %s39
      %s59 = sphi 0, %s59
      %s61 = sphi 0, %s59
      %s62 = sphi 0, %s61
      %s76 = sphi 0, %s62
      %s82 = sphi 0, %s84
      %s85 = sphi 0, %s82
      %s86 = sphi 0, %s85
      %s102 = sphi 0, %s86
    $region4: #{_gcn_forward_padded.3} parent=1 // loop_header_branch
      %14 = sbr.rel (%p12) target = $region8
    $region5: #{_gcn_forward_padded.3} parent=1 // loop_body
      %s16 = ssub.s32 %s11, 1
      %s17 = ssub.s32 %s11, 2
      %s24 = sadd.s32 1, %s19
      %p25 = scmp.ge.s32.totalorder %s24, 3
      %s26 = scalar_select %p25, 0, %s24
      %s27 = sadd.s32 1, %s18
      %s28 = scalar_select %p25, %s27, %s18
      %p29 = scmp.ge.s32.totalorder %s28, 3
      %s30 = scalar_select %p29, 0, %s28
      %s31 = ssub.s32 %s18, %s30
      %s32 = ssub.s32 %s19, %s26
      %s33 = sor.u32 %s31, %s32
      %p34 = scmp.eq.s32.totalorder %s33, 0
      %s36 = sadd.s32 %s35, 1
      %s37 = scalar_select %p34, %s35, %s36
      %p40 = pneg %p34
      %p41 = scmp.eq.s32.totalorder %s11, 8
      %p42 = por %p40, %p41
      %p43 = scmp.ne.s32.totalorder %s35, %s38
      %p44 = scmp.eq.s32.totalorder %s11, 0
      %p45 = por %p43, %p44
      %p46 = scmp.ne.s32.totalorder %s35, %s38
      %p47 = scmp.eq.s32.totalorder %s16, 8
      %p48 = por %p46, %p47
      %p49 = scmp.ne.s32.totalorder %s38, %s39
      %p50 = scmp.eq.s32.totalorder %s16, 0
      %p51 = por %p49, %p50
      %p52 = scmp.ne.s32.totalorder %s38, %s39
      %p53 = scmp.eq.s32.totalorder %s17, 8
      %p54 = por %p52, %p53
      %p56 = scmp.ne.s32.totalorder %s39, %s55
      %p57 = scmp.eq.s32.totalorder %s17, 0
      %p58 = por %p56, %p57
      %s60 = sadd.s32 %s59, 1
      %p63 = scmp.eq.s32.totalorder %s11, 8
      %p64 = scmp.ne.s32.totalorder %s59, %s61
      %p65 = scmp.eq.s32.totalorder %s11, 0
      %p66 = por %p64, %p65
      %p67 = scmp.ne.s32.totalorder %s59, %s61
      %p68 = scmp.eq.s32.totalorder %s16, 8
      %p69 = por %p67, %p68
      %p70 = scmp.ne.s32.totalorder %s61, %s62
      %p71 = scmp.eq.s32.totalorder %s16, 0
      %p72 = por %p70, %p71
      %p73 = scmp.ne.s32.totalorder %s61, %s62
      %p74 = scmp.eq.s32.totalorder %s17, 8
      %p75 = por %p73, %p74
      %p77 = scmp.ne.s32.totalorder %s62, %s76
      %p78 = scmp.eq.s32.totalorder %s17, 0
      %p79 = por %p77, %p78
      %s80 = ssub.s32 %s18, %s30
      %p81 = scmp.eq.s32.totalorder %s80, 0
      %s83 = sadd.s32 %s82, 1
      %s84 = scalar_select %p81, %s82, %s83
      %p87 = pneg %p81
      %p88 = scmp.eq.s32.totalorder %s11, 8
      %p89 = por %p87, %p88
      %p90 = scmp.ne.s32.totalorder %s82, %s85
      %p91 = scmp.eq.s32.totalorder %s11, 0
      %p92 = por %p90, %p91
      %p93 = scmp.ne.s32.totalorder %s82, %s85
      %p94 = scmp.eq.s32.totalorder %s16, 8
      %p95 = por %p93, %p94
      %p96 = scmp.ne.s32.totalorder %s85, %s86
      %p97 = scmp.eq.s32.totalorder %s16, 0
      %p98 = por %p96, %p97
      %p99 = scmp.ne.s32.totalorder %s85, %s86
      %p100 = scmp.eq.s32.totalorder %s17, 8
      %p101 = por %p99, %p100
      %p103 = scmp.ne.s32.totalorder %s86, %s102
      %p104 = scmp.eq.s32.totalorder %s17, 0
      %p105 = por %p103, %p104
      %p106 = scmp.le.s32.totalorder 1, %s11
      %p107 = scmp.lt.s32.totalorder %s11, 10
      %p108 = pnand %p106, %p107
      %p109 = pneg %p108
      // Predicated region
      $region9: #{_gcn_forward_padded.3} parent=5 // pred_check
        _
      $region10: #{_gcn_forward_padded.3} parent=5 // pred_check_branch
        %111 = sbr.rel (%p108) target = $region12
      $region11: #{_gcn_forward_padded.3} parent=5 // pred_region
        %s112 = ssub.s32 %s11, 1
        // Predicated region
        $region13: #{_gcn_forward_padded.3} parent=11 // pred_check
          %p113 = pneg %p72
        $region14: #{_gcn_forward_padded.3} parent=11 // pred_check_branch
          %115 = sbr.rel (%p113) target = $region16
        $region15: #{_gcn_forward_padded.3} parent=11 // pred_region
          _
        $region16: #{_gcn_forward_padded.3} parent=11 // pred_fallthru
          _
      $region12: #{_gcn_forward_padded.3} parent=5 // pred_fallthru
        _
      %p116 = scmp.lt.s32.totalorder %s11, 9
      // Predicated region
      $region17: #{_gcn_forward_padded.3} parent=5 // pred_check
        %p117 = pneg %p116
      $region18: #{_gcn_forward_padded.3} parent=5 // pred_check_branch
        %119 = sbr.rel (%p117) target = $region20
      $region19: #{_gcn_forward_padded.3} parent=5 // pred_region
        // Predicated region
        $region21: #{_gcn_forward_padded.3} parent=19 // pred_check
          %p120 = pneg %p45
        $region22: #{_gcn_forward_padded.3} parent=19 // pred_check_branch
          %122 = sbr.rel (%p120) target = $region24
        $region23: #{_gcn_forward_padded.3} parent=19 // pred_region
          %s123 = sand.u32 %s35, 1
          %s124 = scalar_lea.sflag [#allocation4], %s123
          %s125 = sand.u32 %s35, 1
          %s126 = smul.addr %s125, 128
          %s127 = scalar_lea.vmem [#allocation3], %s126
          %s128 = smul.u32 16, %s18
          %s130 = ssub.s32 2048, 2048
          %131 = vsyncadd %s124, %s130
          %s132 = smul.addr %s128, 3
          %s133 = sadd.s32 %s19, %s132
          %s134 = smul.addr %s133, 128
          %s135 = scalar_lea.hbm %s0, %s134
          %s136 = sshll.u32 %s127, 4
          %s137 = int_to_ptr.vmem [resolvable:$true] %s136
          %142 = dma.hbm_to_vmem [thread:$0]  %s135, 2048, %s137, %s124, 384, 128, 8
        $region24: #{_gcn_forward_padded.3} parent=19 // pred_fallthru
          _
      $region20: #{_gcn_forward_padded.3} parent=5 // pred_fallthru
        _
      %p143 = scmp.le.s32.totalorder 1, %s11
      %p144 = scmp.lt.s32.totalorder %s11, 10
      %p145 = pnand %p143, %p144
      %p146 = pneg %p145
      // Predicated region
      $region25: #{_gcn_forward_padded.3} parent=5 // pred_check
        _
      $region26: #{_gcn_forward_padded.3} parent=5 // pred_check_branch
        %148 = sbr.rel (%p145) target = $region28
      $region27: #{_gcn_forward_padded.3} parent=5 // pred_region
        %s149 = ssub.s32 %s11, 1
        %s150 = sand.u32 %s38, 1
        %s151 = scalar_lea.sflag [#allocation4], %s150
        %s152 = sand.u32 %s38, 1
        %s153 = smul.addr %s152, 128
        %s154 = scalar_lea.vmem [#allocation3], %s153
        // Predicated region
        $region29: #{_gcn_forward_padded.3} parent=27 // pred_check
          %p155 = pneg %p51
        $region30: #{_gcn_forward_padded.3} parent=27 // pred_check_branch
          %157 = sbr.rel (%p155) target = $region32
        $region31: #{_gcn_forward_padded.3} parent=27 // pred_region
          %158 = dma.done %s151, 2048
        $region32: #{_gcn_forward_padded.3} parent=27 // pred_fallthru
          _
        %s159 = sand.u32 %s38, 1
        %s160 = scalar_lea.sflag [#allocation4], %s159
        %s161 = sand.u32 %s38, 1
        %s162 = smul.addr %s161, 128
        %s163 = scalar_lea.vmem [#allocation3], %s162
        %p164 = pneg %p51
        %p165 = pneg %p48
        %p166 = pneg %p72
        %p167 = pneg %p69
        %p168 = pneg %p98
        %p169 = pneg %p95
        %s170 = smul.u32 16, %s20
        %p171 = scmp.lt.s32.totalorder %s170, 47
        %s172 = scalar_select %p171, %s170, 47
        %s173 = smul.addr %s172, 8
        %s174 = scalar_lea.vmem %s2, %s173
        %s175 = smul.u32 16, %s20
        %s176 = smul.u32 16, %s20
        %p177 = scmp.lt.s32.totalorder %s176, 47
        %s178 = scalar_select %p177, %s176, 47
        %s179 = smul.addr %s178, 8
        %s180 = scalar_lea.vmem %s2, %s179
        %s181 = smul.u32 16, %s20
        %p182 = scmp.eq.s32.totalorder %s21, 0
        // Predicated region
        $region33: #{_gcn_forward_padded.3} parent=27 // pred_check
          %p183 = pneg %p182
        $region34: #{_gcn_forward_padded.3} parent=27 // pred_check_branch
          %185 = sbr.rel (%p183) target = $region36
        $region35: #{_gcn_forward_padded.3} parent=27 // pred_region
          %186 = vst [vmem:[#allocation2] sm:$0xff] 0.0
          %187 = vst [vmem:[#allocation2 + $0x8] sm:$0xff] 0.0
          %188 = vst [vmem:[#allocation2 + $0x10] sm:$0xff] 0.0
          %189 = vst [vmem:[#allocation2 + $0x18] sm:$0xff] 0.0
          %190 = vst [vmem:[#allocation2 + $0x20] sm:$0xff] 0.0
          %191 = vst [vmem:[#allocation2 + $0x28] sm:$0xff] 0.0
          %192 = vst [vmem:[#allocation2 + $0x30] sm:$0xff] 0.0
          %193 = vst [vmem:[#allocation2 + $0x38] sm:$0xff] 0.0
          %194 = vst [vmem:[#allocation2 + $0x40] sm:$0xff] 0.0
          %195 = vst [vmem:[#allocation2 + $0x48] sm:$0xff] 0.0
          %196 = vst [vmem:[#allocation2 + $0x50] sm:$0xff] 0.0
          %197 = vst [vmem:[#allocation2 + $0x58] sm:$0xff] 0.0
          %198 = vst [vmem:[#allocation2 + $0x60] sm:$0xff] 0.0
          %199 = vst [vmem:[#allocation2 + $0x68] sm:$0xff] 0.0
          %200 = vst [vmem:[#allocation2 + $0x70] sm:$0xff] 0.0
          %201 = vst [vmem:[#allocation2 + $0x78] sm:$0xff] 0.0
        $region36: #{_gcn_forward_padded.3} parent=27 // pred_fallthru
          _
        %s202 = smul.u32 %s21, 128
        %s203 = scalar_lea.vmem %s1, %s202
        %v204 = vld [vmem:[%s203] sm:$0xff]
        %v205 = vld [vmem:[%s203 + $0x8] sm:$0xff]
        %v206 = vld [vmem:[%s203 + $0x10] sm:$0xff]
        %v207 = vld [vmem:[%s203 + $0x18] sm:$0xff]
        %v208 = vld [vmem:[%s203 + $0x20] sm:$0xff]
        %v209 = vld [vmem:[%s203 + $0x28] sm:$0xff]
        %v210 = vld [vmem:[%s203 + $0x30] sm:$0xff]
        %v211 = vld [vmem:[%s203 + $0x38] sm:$0xff]
        %v212 = vld [vmem:[%s203 + $0x40] sm:$0xff]
        %v213 = vld [vmem:[%s203 + $0x48] sm:$0xff]
        %v214 = vld [vmem:[%s203 + $0x50] sm:$0xff]
        %v215 = vld [vmem:[%s203 + $0x58] sm:$0xff]
        %v216 = vld [vmem:[%s203 + $0x60] sm:$0xff]
        %v217 = vld [vmem:[%s203 + $0x68] sm:$0xff]
        %v218 = vld [vmem:[%s203 + $0x70] sm:$0xff]
        %v219 = vld [vmem:[%s203 + $0x78] sm:$0xff]
        %v220 = vld [vmem:[#allocation2] sm:$0xff]
        %v221 = vld [vmem:[#allocation2 + $0x8] sm:$0xff]
        %v222 = vld [vmem:[#allocation2 + $0x10] sm:$0xff]
        %v223 = vld [vmem:[#allocation2 + $0x18] sm:$0xff]
        %v224 = vld [vmem:[#allocation2 + $0x20] sm:$0xff]
        %v225 = vld [vmem:[#allocation2 + $0x28] sm:$0xff]
        %v226 = vld [vmem:[#allocation2 + $0x30] sm:$0xff]
        %v227 = vld [vmem:[#allocation2 + $0x38] sm:$0xff]
        %v228 = vld [vmem:[#allocation2 + $0x40] sm:$0xff]
        %v229 = vld [vmem:[#allocation2 + $0x48] sm:$0xff]
        %v230 = vld [vmem:[#allocation2 + $0x50] sm:$0xff]
        %v231 = vld [vmem:[#allocation2 + $0x58] sm:$0xff]
        %v232 = vld [vmem:[#allocation2 + $0x60] sm:$0xff]
        %v233 = vld [vmem:[#allocation2 + $0x68] sm:$0xff]
        %v234 = vld [vmem:[#allocation2 + $0x70] sm:$0xff]
        %v235 = vld [vmem:[#allocation2 + $0x78] sm:$0xff]
        %v236 = vld [vmem:[%s154] sm:$0xff]
        %v237 = vld [vmem:[%s154 + $0x8] sm:$0xff]
        %v238 = vld [vmem:[%s154 + $0x10] sm:$0xff]
        %v239 = vld [vmem:[%s154 + $0x18] sm:$0xff]
        %v240 = vld [vmem:[%s154 + $0x20] sm:$0xff]
        %v241 = vld [vmem:[%s154 + $0x28] sm:$0xff]
        %v242 = vld [vmem:[%s154 + $0x30] sm:$0xff]
        %v243 = vld [vmem:[%s154 + $0x38] sm:$0xff]
        %v244 = vld [vmem:[%s154 + $0x40] sm:$0xff]
        %v245 = vld [vmem:[%s154 + $0x48] sm:$0xff]
        %v246 = vld [vmem:[%s154 + $0x50] sm:$0xff]
        %v247 = vld [vmem:[%s154 + $0x58] sm:$0xff]
        %v248 = vld [vmem:[%s154 + $0x60] sm:$0xff]
        %v249 = vld [vmem:[%s154 + $0x68] sm:$0xff]
        %v250 = vld [vmem:[%s154 + $0x70] sm:$0xff]
        %v251 = vld [vmem:[%s154 + $0x78] sm:$0xff]
        %252 = vmatprep.subr.mxu0 0.0
        %253 = vmatpush1.msra.mxu0 %v204
        %254 = vmatprep.subr.mxu0 0.0
        %255 = vmatpush1.msra.mxu0 %v205
        %256 = vmatprep.subr.mxu0 0.0
        %257 = vmatpush1.msra.mxu0 %v206
        %258 = vmatprep.subr.mxu0 0.0
        %259 = vmatpush1.msra.mxu0 %v207
        %260 = vmatprep.subr.mxu0 0.0
        %261 = vmatpush1.msra.mxu0 %v208
        %262 = vmatprep.subr.mxu0 0.0
        %263 = vmatpush1.msra.mxu0 %v209
        %264 = vmatprep.subr.mxu0 0.0
        %265 = vmatpush1.msra.mxu0 %v210
        %266 = vmatprep.subr.mxu0 0.0
        %267 = vmatpush1.msra.mxu0 %v211
        %268 = vmatprep.subr.mxu0 0.0
        %269 = vmatpush1.msra.mxu0 %v212
        %270 = vmatprep.subr.mxu0 0.0
        %271 = vmatpush1.msra.mxu0 %v213
        %272 = vmatprep.subr.mxu0 0.0
        %273 = vmatpush1.msra.mxu0 %v214
        %274 = vmatprep.subr.mxu0 0.0
        %275 = vmatpush1.msra.mxu0 %v215
        %276 = vmatprep.subr.mxu0 0.0
        %277 = vmatpush1.msra.mxu0 %v216
        %278 = vmatprep.subr.mxu0 0.0
        %279 = vmatpush1.msra.mxu0 %v217
        %280 = vmatprep.subr.mxu0 0.0
        %281 = vmatpush1.msra.mxu0 %v218
        %282 = vmatprep.subr.mxu0 0.0
        %283 = vmatpush1.msra.mxu0 %v219
        %284 = vmatprep.subr.mxu0 0.0
        %285 = vmatpush1.msra.mxu0 0.0
        %286 = vmatprep.subr.mxu0 0.0
        %287 = vmatpush1.msra.mxu0 0.0
        %288 = vmatprep.subr.mxu0 0.0
        %289 = vmatpush1.msra.mxu0 0.0
        %290 = vmatprep.subr.mxu0 0.0
        %291 = vmatpush1.msra.mxu0 0.0
        %292 = vmatprep.subr.mxu0 0.0
        %293 = vmatpush1.msra.mxu0 0.0
        %294 = vmatprep.subr.mxu0 0.0
        %295 = vmatpush1.msra.mxu0 0.0
        %296 = vmatprep.subr.mxu0 0.0
        %297 = vmatpush1.msra.mxu0 0.0
        %298 = vmatprep.subr.mxu0 0.0
        %299 = vmatpush1.msra.mxu0 0.0
        %300 = vmatprep.subr.mxu0 0.0
        %301 = vmatpush1.msra.mxu0 0.0
        %302 = vmatprep.subr.mxu0 0.0
        %303 = vmatpush1.msra.mxu0 0.0
        %304 = vmatprep.subr.mxu0 0.0
        %305 = vmatpush1.msra.mxu0 0.0
        %306 = vmatprep.subr.mxu0 0.0
        %307 = vmatpush1.msra.mxu0 0.0
        %308 = vmatprep.subr.mxu0 0.0
        %309 = vmatpush1.msra.mxu0 0.0
        %310 = vmatprep.subr.mxu0 0.0
        %311 = vmatpush1.msra.mxu0 0.0
        %312 = vmatprep.subr.mxu0 0.0
        %313 = vmatpush1.msra.mxu0 0.0
        %314 = vmatprep.subr.mxu0 0.0
        %315 = vmatpush1.msra.mxu0 0.0
        %316 = vmatprep.mubr.f32.mxu0 0.0
        %317 = vmatmul.mubr.f32.gmra.mrb[0].mxu0 %v236
        %v318 = vpop.f32.mrb[0].mxu0
        %v319 = vadd.f32 0.0, %v318
        %v320 = vpop.f32.mrb[0].mxu0
        %321 = vmatprep.mubr.f32.mxu0 0.0
        %322 = vmatmul.mubr.f32.gmra.mrb[0].mxu0 %v237
        %v323 = vpop.f32.mrb[0].mxu0
        %v324 = vadd.f32 0.0, %v323
        %v325 = vpop.f32.mrb[0].mxu0
        %326 = vmatprep.mubr.f32.mxu0 0.0
        %327 = vmatmul.mubr.f32.gmra.mrb[0].mxu0 %v238
        %v328 = vpop.f32.mrb[0].mxu0
        %v329 = vadd.f32 0.0, %v328
        %v330 = vpop.f32.mrb[0].mxu0
        %331 = vmatprep.mubr.f32.mxu0 0.0
        %332 = vmatmul.mubr.f32.gmra.mrb[0].mxu0 %v239
        %v333 = vpop.f32.mrb[0].mxu0
        %v334 = vadd.f32 0.0, %v333
        %v335 = vpop.f32.mrb[0].mxu0
        %336 = vmatprep.mubr.f32.mxu0 0.0
        %337 = vmatmul.mubr.f32.gmra.mrb[0].mxu0 %v240
        %v338 = vpop.f32.mrb[0].mxu0
        %v339 = vadd.f32 0.0, %v338
        %v340 = vpop.f32.mrb[0].mxu0
        %341 = vmatprep.mubr.f32.mxu0 0.0
        %342 = vmatmul.mubr.f32.gmra.mrb[0].mxu0 %v241
        %v343 = vpop.f32.mrb[0].mxu0
        %v344 = vadd.f32 0.0, %v343
        %v345 = vpop.f32.mrb[0].mxu0
        %346 = vmatprep.mubr.f32.mxu0 0.0
        %347 = vmatmul.mubr.f32.gmra.mrb[0].mxu0 %v242
        %v348 = vpop.f32.mrb[0].mxu0
        %v349 = vadd.f32 0.0, %v348
        %v350 = vpop.f32.mrb[0].mxu0
        %351 = vmatprep.mubr.f32.mxu0 0.0
        %352 = vmatmul.mubr.f32.gmra.mrb[0].mxu0 %v243
        %v353 = vpop.f32.mrb[0].mxu0
        %v354 = vadd.f32 0.0, %v353
        %v355 = vpop.f32.mrb[0].mxu0
        %356 = vmatprep.mubr.f32.mxu0 0.0
        %357 = vmatmul.mubr.f32.gmra.mrb[0].mxu0 %v244
        %v358 = vpop.f32.mrb[0].mxu0
        %v359 = vadd.f32 0.0, %v358
        %v360 = vpop.f32.mrb[0].mxu0
        %361 = vmatprep.mubr.f32.mxu0 0.0
        %362 = vmatmul.mubr.f32.gmra.mrb[0].mxu0 %v245
        %v363 = vpop.f32.mrb[0].mxu0
        %v364 = vadd.f32 0.0, %v363
        %v365 = vpop.f32.mrb[0].mxu0
        %366 = vmatprep.mubr.f32.mxu0 0.0
        %367 = vmatmul.mubr.f32.gmra.mrb[0].mxu0 %v246
        %v368 = vpop.f32.mrb[0].mxu0
        %v369 = vadd.f32 0.0, %v368
        %v370 = vpop.f32.mrb[0].mxu0
        %371 = vmatprep.mubr.f32.mxu0 0.0
        %372 = vmatmul.mubr.f32.gmra.mrb[0].mxu0 %v247
        %v373 = vpop.f32.mrb[0].mxu0
        %v374 = vadd.f32 0.0, %v373
        %v375 = vpop.f32.mrb[0].mxu0
        %376 = vmatprep.mubr.f32.mxu0 0.0
        %377 = vmatmul.mubr.f32.gmra.mrb[0].mxu0 %v248
        %v378 = vpop.f32.mrb[0].mxu0
        %v379 = vadd.f32 0.0, %v378
        %v380 = vpop.f32.mrb[0].mxu0
        %381 = vmatprep.mubr.f32.mxu0 0.0
        %382 = vmatmul.mubr.f32.gmra.mrb[0].mxu0 %v249
        %v383 = vpop.f32.mrb[0].mxu0
        %v384 = vadd.f32 0.0, %v383
        %v385 = vpop.f32.mrb[0].mxu0
        %386 = vmatprep.mubr.f32.mxu0 0.0
        %387 = vmatmul.mubr.f32.gmra.mrb[0].mxu0 %v250
        %v388 = vpop.f32.mrb[0].mxu0
        %v389 = vadd.f32 0.0, %v388
        %v390 = vpop.f32.mrb[0].mxu0
        %391 = vmatprep.mubr.f32.mxu0 0.0
        %392 = vmatmul.mubr.f32.gmra.mrb[0].mxu0 %v251
        %v393 = vpop.f32.mrb[0].mxu0
        %v394 = vadd.f32 0.0, %v393
        %v395 = vpop.f32.mrb[0].mxu0
        %396 = vdwg.mxu0
        %v397 = vadd.f32 %v220, %v319
        %v398 = vadd.f32 %v221, %v324
        %v399 = vadd.f32 %v222, %v329
        %v400 = vadd.f32 %v223, %v334
        %v401 = vadd.f32 %v224, %v339
        %v402 = vadd.f32 %v225, %v344
        %v403 = vadd.f32 %v226, %v349
        %v404 = vadd.f32 %v227, %v354
        %v405 = vadd.f32 %v228, %v359
        %v406 = vadd.f32 %v229, %v364
        %v407 = vadd.f32 %v230, %v369
        %v408 = vadd.f32 %v231, %v374
        %v409 = vadd.f32 %v232, %v379
        %v410 = vadd.f32 %v233, %v384
        %v411 = vadd.f32 %v234, %v389
        %v412 = vadd.f32 %v235, %v394
        %413 = vst [vmem:[#allocation2] sm:$0xff] %v397
        %414 = vst [vmem:[#allocation2 + $0x8] sm:$0xff] %v398
        %415 = vst [vmem:[#allocation2 + $0x10] sm:$0xff] %v399
        %416 = vst [vmem:[#allocation2 + $0x18] sm:$0xff] %v400
        %417 = vst [vmem:[#allocation2 + $0x20] sm:$0xff] %v401
        %418 = vst [vmem:[#allocation2 + $0x28] sm:$0xff] %v402
        %419 = vst [vmem:[#allocation2 + $0x30] sm:$0xff] %v403
        %420 = vst [vmem:[#allocation2 + $0x38] sm:$0xff] %v404
        %421 = vst [vmem:[#allocation2 + $0x40] sm:$0xff] %v405
        %422 = vst [vmem:[#allocation2 + $0x48] sm:$0xff] %v406
        %423 = vst [vmem:[#allocation2 + $0x50] sm:$0xff] %v407
        %424 = vst [vmem:[#allocation2 + $0x58] sm:$0xff] %v408
        %425 = vst [vmem:[#allocation2 + $0x60] sm:$0xff] %v409
        %426 = vst [vmem:[#allocation2 + $0x68] sm:$0xff] %v410
        %427 = vst [vmem:[#allocation2 + $0x70] sm:$0xff] %v411
        %428 = vst [vmem:[#allocation2 + $0x78] sm:$0xff] %v412
        %p429 = scmp.eq.s32.totalorder %s21, 2
        // Predicated region
        $region37: #{_gcn_forward_padded.3} parent=27 // pred_check
          %p430 = pneg %p429
        $region38: #{_gcn_forward_padded.3} parent=27 // pred_check_branch
          %432 = sbr.rel (%p430) target = $region40
        $region39: #{_gcn_forward_padded.3} parent=27 // pred_region
          %v433 = vld [vmem:[#allocation2] sm:$0xff]
          %v434 = vld [vmem:[#allocation2 + $0x8] sm:$0xff]
          %v435 = vld [vmem:[#allocation2 + $0x10] sm:$0xff]
          %v436 = vld [vmem:[#allocation2 + $0x18] sm:$0xff]
          %v437 = vld [vmem:[#allocation2 + $0x20] sm:$0xff]
          %v438 = vld [vmem:[#allocation2 + $0x28] sm:$0xff]
          %v439 = vld [vmem:[#allocation2 + $0x30] sm:$0xff]
          %v440 = vld [vmem:[#allocation2 + $0x38] sm:$0xff]
          %v441 = vld [vmem:[#allocation2 + $0x40] sm:$0xff]
          %v442 = vld [vmem:[#allocation2 + $0x48] sm:$0xff]
          %v443 = vld [vmem:[#allocation2 + $0x50] sm:$0xff]
          %v444 = vld [vmem:[#allocation2 + $0x58] sm:$0xff]
          %v445 = vld [vmem:[#allocation2 + $0x60] sm:$0xff]
          %v446 = vld [vmem:[#allocation2 + $0x68] sm:$0xff]
          %v447 = vld [vmem:[#allocation2 + $0x70] sm:$0xff]
          %v448 = vld [vmem:[#allocation2 + $0x78] sm:$0xff]
          %v449 = vmax.f32 %v433, 0.0
          %v450 = vmax.f32 %v434, 0.0
          %v451 = vmax.f32 %v435, 0.0
          %v452 = vmax.f32 %v436, 0.0
          %v453 = vmax.f32 %v437, 0.0
          %v454 = vmax.f32 %v438, 0.0
          %v455 = vmax.f32 %v439, 0.0
          %v456 = vmax.f32 %v440, 0.0
          %v457 = vmax.f32 %v441, 0.0
          %v458 = vmax.f32 %v442, 0.0
          %v459 = vmax.f32 %v443, 0.0
          %v460 = vmax.f32 %v444, 0.0
          %v461 = vmax.f32 %v445, 0.0
          %v462 = vmax.f32 %v446, 0.0
          %v463 = vmax.f32 %v447, 0.0
          %v464 = vmax.f32 %v448, 0.0
          %465 = vst [vmem:[%s180] sm:$0xff] %v449
          %466 = vst [vmem:[%s180 + $0x8] sm:$0xff] %v450
          %467 = vst [vmem:[%s180 + $0x10] sm:$0xff] %v451
          %468 = vst [vmem:[%s180 + $0x18] sm:$0xff] %v452
          %469 = vst [vmem:[%s180 + $0x20] sm:$0xff] %v453
          %470 = vst [vmem:[%s180 + $0x28] sm:$0xff] %v454
          %471 = vst [vmem:[%s180 + $0x30] sm:$0xff] %v455
          %472 = vst [vmem:[%s180 + $0x38] sm:$0xff] %v456
          %473 = vst [vmem:[%s180 + $0x40] sm:$0xff] %v457
          %474 = vst [vmem:[%s180 + $0x48] sm:$0xff] %v458
          %475 = vst [vmem:[%s180 + $0x50] sm:$0xff] %v459
          %476 = vst [vmem:[%s180 + $0x58] sm:$0xff] %v460
          %477 = vst [vmem:[%s180 + $0x60] sm:$0xff] %v461
          %478 = vst [vmem:[%s180 + $0x68] sm:$0xff] %v462
          %479 = vst [vmem:[%s180 + $0x70] sm:$0xff] %v463
          %480 = vst [vmem:[%s180 + $0x78] sm:$0xff] %v464
        $region40: #{_gcn_forward_padded.3} parent=27 // pred_fallthru
          _
        %s481 = smul.u32 16, %s20
        %p482 = scmp.lt.s32.totalorder %s481, 47
        %s483 = scalar_select %p482, %s481, 47
        %s484 = smul.addr %s483, 8
        %s485 = scalar_lea.vmem %s2, %s484
        // Predicated region
        $region41: #{_gcn_forward_padded.3} parent=27 // pred_check
          %p486 = pneg %p95
        $region42: #{_gcn_forward_padded.3} parent=27 // pred_check_branch
          %488 = sbr.rel (%p486) target = $region44
        $region43: #{_gcn_forward_padded.3} parent=27 // pred_region
          %s489 = smul.u32 16, %s20
        $region44: #{_gcn_forward_padded.3} parent=27 // pred_fallthru
          _
      $region28: #{_gcn_forward_padded.3} parent=5 // pred_fallthru
        _
      %p490 = scmp.le.s32.totalorder 2, %s11
      // Predicated region
      $region45: #{_gcn_forward_padded.3} parent=5 // pred_check
        %p491 = pneg %p490
      $region46: #{_gcn_forward_padded.3} parent=5 // pred_check_branch
        %493 = sbr.rel (%p491) target = $region48
      $region47: #{_gcn_forward_padded.3} parent=5 // pred_region
        %s494 = ssub.s32 %s11, 2
        // Predicated region
        $region49: #{_gcn_forward_padded.3} parent=47 // pred_check
          %p495 = pneg %p101
        $region50: #{_gcn_forward_padded.3} parent=47 // pred_check_branch
          %497 = sbr.rel (%p495) target = $region52
        $region51: #{_gcn_forward_padded.3} parent=47 // pred_region
          %s498 = smul.u32 16, %s22
          %p499 = scmp.lt.s32.totalorder %s498, 47
          %s500 = scalar_select %p499, %s498, 47
          %s501 = smul.addr %s500, 8
          %s502 = scalar_lea.vmem %s2, %s501
        $region52: #{_gcn_forward_padded.3} parent=47 // pred_fallthru
          _
      $region48: #{_gcn_forward_padded.3} parent=5 // pred_fallthru
        _
    $region6: #{_gcn_forward_padded.3} parent=1 // loop_footer
      %s15 = sadd.s32 1, %s11
    $region7: #{_gcn_forward_padded.3} parent=1 // loop_footer_branch
      %10 = sbr.rel target = $region3
    $region8: #{_gcn_forward_padded.3} parent=1 // loop_exit
      _
    %503 = vsyncpa [#allocation4], 1
    %s504 = scalar_lea.sflag [#allocation4], 1
    %505 = vsyncpa %s504, 1

</llo_original>
